<compile_context>
chip_gen: v7x
topology: tpu7x:2x2x1
jax: 0.10.0
libtpu: 0.0.40
codegen_flags: <defaults>
</compile_context>

<pallas_src>
import jax
import jax.numpy as jnp
from jax.experimental import pallas as pl
from jax.experimental.pallas import tpu as pltpu

LATENT_DIM = 12
HIDDEN = 50
OUT = 10
HIDDEN_PAD = 64    # sublane-padded hidden width (multiple of 8; zero rows benign)


def _round_up(n, m):
    return (n + m - 1) // m * m


def mlp_kernel(xT_ref, w1T_ref, b1_ref, w2T_ref, b2_ref, oT_ref):
    # xT: (12, tb) storage dtype; w1T: (64, 12); b1: (64, 1) f32;
    # w2T: (10, 64); b2: (10, 1) f32; oT: (10, tb).
    # Layer 1 (MXU, f32 accumulation): h_T = w1T @ xT -> (64, tb).
    h = jnp.dot(w1T_ref[...], xT_ref[...], preferred_element_type=jnp.float32)
    # Bias + ReLU in f32 on the VPU (lane-broadcast of the (64, 1) bias).
    h = jnp.maximum(h + b1_ref[...], 0.0)
    # Layer 2: feed the MXU in the weight storage dtype (bf16 path truncates
    # the f32 hidden activations -- intentional), f32 accumulation.
    y = jnp.dot(w2T_ref[...], h.astype(w2T_ref.dtype),
                preferred_element_type=jnp.float32)
    y = y + b2_ref[...]
    oT_ref[...] = y.astype(oT_ref.dtype)


def mlp_forward(x, w1T, b1p, w2T, b2p, *, tb=8192, out_dtype=None):
    """x: (B, 12). Params from pad_params (transposed layout). Returns (B, 10).

    out_dtype defaults to x.dtype; pass jnp.float32 explicitly if the caller
    needs f32 outputs from bf16 inputs.
    """
    B = x.shape[0]
    out_dtype = jnp.dtype(x.dtype if out_dtype is None else out_dtype)

    # Batch tile: multiple of 128 lanes; capped so the grid has >=4 steps when
    # B permits (lets v7x's 2 TCs split the "parallel" axis), never exceeds Bp.
    tb_cap = max(128, _round_up(-(-B // 4), 128))
    tb = _round_up(max(128, min(tb, tb_cap)), 128)
    Bp = _round_up(B, tb)

    xT = x.T                                   # (12, B): tiny wrapper transpose
    if Bp != B:
        xT = jnp.pad(xT, ((0, 0), (0, Bp - B)))

    cost = pl.CostEstimate(
        flops=2 * Bp * (LATENT_DIM * HIDDEN_PAD + HIDDEN_PAD * OUT),
        transcendentals=0,
        bytes_accessed=(Bp * LATENT_DIM * xT.dtype.itemsize
                        + Bp * OUT * out_dtype.itemsize
                        + w1T.size * w1T.dtype.itemsize
                        + w2T.size * w2T.dtype.itemsize
                        + (b1p.size + b2p.size) * 4),
    )

    outT = pl.pallas_call(
        mlp_kernel,
        out_shape=jax.ShapeDtypeStruct((OUT, Bp), out_dtype),
        grid_spec=pl.GridSpec(
            grid=(Bp // tb,),
            in_specs=[
                pl.BlockSpec((LATENT_DIM, tb), lambda i: (0, i)),          # xT (streamed)
                pl.BlockSpec((HIDDEN_PAD, LATENT_DIM), lambda i: (0, 0)),  # w1T (resident)
                pl.BlockSpec((HIDDEN_PAD, 1), lambda i: (0, 0)),           # b1  (resident)
                pl.BlockSpec((OUT, HIDDEN_PAD), lambda i: (0, 0)),         # w2T (resident)
                pl.BlockSpec((OUT, 1), lambda i: (0, 0)),                  # b2  (resident)
            ],
            out_specs=pl.BlockSpec((OUT, tb), lambda i: (0, i)),
        ),
        compiler_params=pltpu.CompilerParams(
            dimension_semantics=("parallel",),   # independent batch axis (v7x 2-TC split)
        ),
        cost_estimate=cost,
    )(xT, w1T, b1p, w2T, b2p)

    # (10, Bp) -> (B, 10): only ~40*B useful bytes now, trivially cheap.
    return outT[:, :B].T


def init_params(key):
    # PyTorch nn.Linear default init: U(-1/sqrt(fan_in), 1/sqrt(fan_in)).
    k1, k2, k3, k4 = jax.random.split(key, 4)
    bound1 = 1.0 / jnp.sqrt(jnp.float32(LATENT_DIM))
    bound2 = 1.0 / jnp.sqrt(jnp.float32(HIDDEN))
    w1 = jax.random.uniform(k1, (LATENT_DIM, HIDDEN), jnp.float32, -bound1, bound1)
    b1 = jax.random.uniform(k2, (HIDDEN,), jnp.float32, -bound1, bound1)
    w2 = jax.random.uniform(k3, (HIDDEN, OUT), jnp.float32, -bound2, bound2)
    b2 = jax.random.uniform(k4, (OUT,), jnp.float32, -bound2, bound2)
    return w1, b1, w2, b2


def pad_params(w1, b1, w2, b2, dtype=jnp.float32):
    """Transpose + zero-pad params to the lane-dense-on-batch kernel layout.

    Biases stay f32 (they only ride the f32 VPU elementwise path).
    Zero padding of hidden rows/cols is benign: padded hidden units are
    ReLU(0 + 0) = 0 and multiply zero columns of w2T.
    """
    w1T = jnp.zeros((HIDDEN_PAD, LATENT_DIM), dtype).at[:HIDDEN, :].set(
        w1.T.astype(dtype))
    b1p = jnp.zeros((HIDDEN_PAD, 1), jnp.float32).at[:HIDDEN, 0].set(b1)
    w2T = jnp.zeros((OUT, HIDDEN_PAD), dtype).at[:, :HIDDEN].set(w2.T.astype(dtype))
    b2p = b2.astype(jnp.float32).reshape(OUT, 1)
    return w1T, b1p, w2T, b2p


if __name__ == "__main__":
    key = jax.random.PRNGKey(0)
    pkey, xkey, xkey2 = jax.random.split(key, 3)
    w1, b1, w2, b2 = init_params(pkey)

    # --- small-batch check (f32 storage), exact vs plain-JAX reference ---
    B = 8
    x = jax.random.normal(xkey, (B, LATENT_DIM), jnp.float32)
    ref = jnp.maximum(x @ w1 + b1[None, :], 0.0) @ w2 + b2[None, :]

    w1T, b1p, w2T, b2p = pad_params(w1, b1, w2, b2, jnp.float32)
    out = jax.block_until_ready(mlp_forward(x, w1T, b1p, w2T, b2p))
    assert out.shape == (B, OUT)
    assert jnp.allclose(out, ref, atol=1e-5, rtol=1e-5)

    # --- multi-tile check: batch tiling + edge padding (grid of 4 tiles) ---
    B2 = 1000
    x2 = jax.random.normal(xkey2, (B2, LATENT_DIM), jnp.float32)
    ref2 = jnp.maximum(x2 @ w1 + b1[None, :], 0.0) @ w2 + b2[None, :]
    out2 = jax.block_until_ready(mlp_forward(x2, w1T, b1p, w2T, b2p, tb=256))
    assert out2.shape == (B2, OUT)
    assert jnp.allclose(out2, ref2, atol=1e-5, rtol=1e-5)

    # --- bf16 storage path (halves HBM bytes; f32 accumulation/elementwise),
    #     explicit f32 output dtype so the final f32 accumulation isn't truncated.
    w1T16, b1p16, w2T16, b2p16 = pad_params(w1, b1, w2, b2, jnp.bfloat16)
    out16 = jax.block_until_ready(
        mlp_forward(x.astype(jnp.bfloat16), w1T16, b1p16, w2T16, b2p16,
                    out_dtype=jnp.float32))
    assert out16.shape == (B, OUT)
    assert out16.dtype == jnp.float32
    assert jnp.allclose(out16, ref, atol=5e-2, rtol=5e-2)

    print("KERNEL_OK")
</pallas_src>

<mosaic_0001>
module attributes {stable_mosaic.version = 11 : i64} {
  func.func @mlp_kernel(%arg0: i32, %arg1: memref<12x128xf32, #tpu.memory_space<vmem>>, %arg2: memref<64x12xf32, #tpu.memory_space<vmem>>, %arg3: memref<64x1xf32, #tpu.memory_space<vmem>>, %arg4: memref<10x64xf32, #tpu.memory_space<vmem>>, %arg5: memref<10x1xf32, #tpu.memory_space<vmem>>, %arg6: memref<10x128xf32, #tpu.memory_space<vmem>>) attributes {dimension_semantics = [#tpu.dimension_semantics<parallel>], iteration_bounds = array<i64: 1>, scalar_prefetch = 0 : i64, scratch_operands = 0 : i64, tpu.core_type = #tpu.core_type<tc>, window_params = [{transform_indices = @transform_0, window_bounds = array<i64: 12, 128>}, {pipeline_mode = #tpu.pipeline_mode<synchronous>, transform_indices = @transform_1, window_bounds = array<i64: 64, 12>}, {pipeline_mode = #tpu.pipeline_mode<synchronous>, transform_indices = @transform_2, window_bounds = array<i64: 64, 1>}, {pipeline_mode = #tpu.pipeline_mode<synchronous>, transform_indices = @transform_3, window_bounds = array<i64: 10, 64>}, {pipeline_mode = #tpu.pipeline_mode<synchronous>, transform_indices = @transform_4, window_bounds = array<i64: 10, 1>}, {transform_indices = @transform_5, window_bounds = array<i64: 10, 128>}]} {
    %c0 = arith.constant 0 : index
    %c0_0 = arith.constant 0 : index
    %0 = vector.load %arg2[%c0, %c0_0] : memref<64x12xf32, #tpu.memory_space<vmem>>, vector<64x12xf32>
    %c0_1 = arith.constant 0 : index
    %c0_2 = arith.constant 0 : index
    %1 = vector.load %arg1[%c0_1, %c0_2] : memref<12x128xf32, #tpu.memory_space<vmem>>, vector<12x128xf32>
    %cst = arith.constant dense<0.000000e+00> : vector<64x128xf32>
    %2 = tpu.matmul %0, %1, %cst {dimension_numbers = #tpu.dot_dimension_numbers<[1], [0], [0], [1], [0, 0, 1, 1], [], []>} : vector<64x12xf32>, vector<12x128xf32>, vector<64x128xf32> -> vector<64x128xf32>
    %c0_3 = arith.constant 0 : index
    %c0_4 = arith.constant 0 : index
    %3 = vector.load %arg3[%c0_3, %c0_4] : memref<64x1xf32, #tpu.memory_space<vmem>>, vector<64x1xf32>
    %4 = vector.broadcast %3 : vector<64x1xf32> to vector<64x128xf32>
    %5 = arith.addf %2, %4 : vector<64x128xf32>
    %cst_5 = arith.constant 0.000000e+00 : f32
    %6 = vector.broadcast %cst_5 : f32 to vector<64x128xf32>
    %7 = arith.maximumf %5, %6 : vector<64x128xf32>
    %c0_6 = arith.constant 0 : index
    %c0_7 = arith.constant 0 : index
    %8 = vector.load %arg4[%c0_6, %c0_7] : memref<10x64xf32, #tpu.memory_space<vmem>>, vector<10x64xf32>
    %cst_8 = arith.constant dense<0.000000e+00> : vector<10x128xf32>
    %9 = tpu.matmul %8, %7, %cst_8 {dimension_numbers = #tpu.dot_dimension_numbers<[1], [0], [0], [1], [0, 0, 1, 1], [], []>} : vector<10x64xf32>, vector<64x128xf32>, vector<10x128xf32> -> vector<10x128xf32>
    %c0_9 = arith.constant 0 : index
    %c0_10 = arith.constant 0 : index
    %10 = vector.load %arg5[%c0_9, %c0_10] : memref<10x1xf32, #tpu.memory_space<vmem>>, vector<10x1xf32>
    %11 = vector.broadcast %10 : vector<10x1xf32> to vector<10x128xf32>
    %12 = arith.addf %9, %11 : vector<10x128xf32>
    %c0_11 = arith.constant 0 : index
    %c0_12 = arith.constant 0 : index
    %13 = vector.load %arg6[%c0_11, %c0_12] : memref<10x128xf32, #tpu.memory_space<vmem>>, vector<10x128xf32>
    tpu.vector_store %arg6[%c0_11, %c0_12], %12 {strides = array<i32>} : memref<10x128xf32, #tpu.memory_space<vmem>>, vector<10x128xf32>,
    return
  }
  func.func @transform_0(%arg0: i32) -> (i32, i32) {
    %c0_i32 = arith.constant 0 : i32
    %c0_i32_0 = arith.constant 0 : i32
    return %c0_i32, %arg0 : i32, i32
  }
  func.func @transform_1(%arg0: i32) -> (i32, i32) {
    %c0_i32 = arith.constant 0 : i32
    %c0_i32_0 = arith.constant 0 : i32
    %c0_i32_1 = arith.constant 0 : i32
    return %c0_i32, %c0_i32_0 : i32, i32
  }
  func.func @transform_2(%arg0: i32) -> (i32, i32) {
    %c0_i32 = arith.constant 0 : i32
    %c0_i32_0 = arith.constant 0 : i32
    %c0_i32_1 = arith.constant 0 : i32
    return %c0_i32, %c0_i32_0 : i32, i32
  }
  func.func @transform_3(%arg0: i32) -> (i32, i32) {
    %c0_i32 = arith.constant 0 : i32
    %c0_i32_0 = arith.constant 0 : i32
    %c0_i32_1 = arith.constant 0 : i32
    return %c0_i32, %c0_i32_0 : i32, i32
  }
  func.func @transform_4(%arg0: i32) -> (i32, i32) {
    %c0_i32 = arith.constant 0 : i32
    %c0_i32_0 = arith.constant 0 : i32
    %c0_i32_1 = arith.constant 0 : i32
    return %c0_i32, %c0_i32_0 : i32, i32
  }
  func.func @transform_5(%arg0: i32) -> (i32, i32) {
    %c0_i32 = arith.constant 0 : i32
    %c0_i32_0 = arith.constant 0 : i32
    return %c0_i32, %arg0 : i32, i32
  }
}

</mosaic_0001>

<llo_original>
// kernel: tpu_custom_call.1
$region0: #{tpu_custom_call.1}
  #allocation0 [shape = 'u32[]', space=smem, size = 0x4, offset = 0x4, fixed_abs, tag = 'smem constant byte address 0x4 - core index']
  #allocation1 [shape = 'u32[144,128]{1,0:T(1,128)}', space=vmem, size = 0x12000, scoped, tag = 'internal scratch']
  %s0 = inlined_call_operand.vmem [shape: f32[12,128], index: 0, kind: input, shape index: {}]
  %s1 = inlined_call_operand.vmem [shape: f32[64,12], index: 1, kind: input, shape index: {}]
  %s2 = inlined_call_operand.vmem [shape: f32[64,1], index: 2, kind: input, shape index: {}]
  %s3 = inlined_call_operand.vmem [shape: f32[10,64], index: 3, kind: input, shape index: {}]
  %s4 = inlined_call_operand.vmem [shape: f32[10,1], index: 4, kind: input, shape index: {}]
  %s5 = inlined_call_operand.hbm [shape: f32[10,128], index: 5, kind: output, shape index: {}]
  %s6 = sld [smem:[#allocation0]]
  $region30: #{tpu_custom_call.1} parent=0
    _
  %s8 = ssub.s32 1, %s6
  %s9 = scalar_select 0, %s8, %s6
  $region1: #{tpu_custom_call.1} parent=0
    #allocation2 [shape = 'u8[8192]{0}', space=vmem, size = 0x2000, scoped, tag = 'output window, operand 0, single buffered']
    #allocation3 [shape = 's32[1]{0}', space=sflag, size = 0x4, scoped, tag = 'scoped memory for tpu_custom_call.1']
    %10 = vsyncpa [#allocation3], 0
    // Predicated region
    $region2: #{tpu_custom_call.1} parent=1 // pred_check
      _
    $region3: #{tpu_custom_call.1} parent=1 // pred_check_branch
      %12 = sbr.rel (0) target = $region5
    $region4: #{tpu_custom_call.1} parent=1 // pred_region
      _
    $region5: #{tpu_custom_call.1} parent=1 // pred_fallthru
      _
    // Predicated region
    $region6: #{tpu_custom_call.1} parent=1 // pred_check
      _
    $region7: #{tpu_custom_call.1} parent=1 // pred_check_branch
      %14 = sbr.rel (0) target = $region9
    $region8: #{tpu_custom_call.1} parent=1 // pred_region
      _
    $region9: #{tpu_custom_call.1} parent=1 // pred_fallthru
      _
    // Predicated region
    $region10: #{tpu_custom_call.1} parent=1 // pred_check
      _
    $region11: #{tpu_custom_call.1} parent=1 // pred_check_branch
      %16 = sbr.rel (0) target = $region13
    $region12: #{tpu_custom_call.1} parent=1 // pred_region
      _
    $region13: #{tpu_custom_call.1} parent=1 // pred_fallthru
      _
    // Predicated region
    $region14: #{tpu_custom_call.1} parent=1 // pred_check
      _
    $region15: #{tpu_custom_call.1} parent=1 // pred_check_branch
      %18 = sbr.rel (0) target = $region17
    $region16: #{tpu_custom_call.1} parent=1 // pred_region
      _
    $region17: #{tpu_custom_call.1} parent=1 // pred_fallthru
      _
    // Predicated region
    $region18: #{tpu_custom_call.1} parent=1 // pred_check
      _
    $region19: #{tpu_custom_call.1} parent=1 // pred_check_branch
      %20 = sbr.rel (0) target = $region21
    $region20: #{tpu_custom_call.1} parent=1 // pred_region
      _
    $region21: #{tpu_custom_call.1} parent=1 // pred_fallthru
      _
    %v21 = vld [vmem:[%s1] sm:$0xff]
    %v22 = vld [vmem:[%s1 + $0x8] sm:$0xff]
    %v23 = vld [vmem:[%s1 + $0x10] sm:$0xff]
    %v24 = vld [vmem:[%s1 + $0x18] sm:$0xff]
    %v25 = vld [vmem:[%s1 + $0x20] sm:$0xff]
    %v26 = vld [vmem:[%s1 + $0x28] sm:$0xff]
    %v27 = vld [vmem:[%s1 + $0x30] sm:$0xff]
    %v28 = vld [vmem:[%s1 + $0x38] sm:$0xff]
    %v29 = vld [vmem:[%s0] sm:$0xff]
    %v30 = vld [vmem:[%s0 + $0x8] sm:$0xf]
    %v31 = vld [vmem:[%s2] sm:$0xff]
    %v32 = vld [vmem:[%s2 + $0x8] sm:$0xff]
    %v33 = vld [vmem:[%s2 + $0x10] sm:$0xff]
    %v34 = vld [vmem:[%s2 + $0x18] sm:$0xff]
    %v35 = vld [vmem:[%s2 + $0x20] sm:$0xff]
    %v36 = vld [vmem:[%s2 + $0x28] sm:$0xff]
    %v37 = vld [vmem:[%s2 + $0x30] sm:$0xff]
    %v38 = vld [vmem:[%s2 + $0x38] sm:$0xff]
    %40 = vset.pattern.permute.xlu0 0
    %41 = vperm.xlu0 %40, %v31
    %v42 = vpop.permute.xlu0 %41
    %45 = vset.pattern.permute.xlu0 0
    %46 = vperm.xlu0 %45, %v32
    %v47 = vpop.permute.xlu0 %46
    %50 = vset.pattern.permute.xlu0 0
    %51 = vperm.xlu0 %50, %v33
    %v52 = vpop.permute.xlu0 %51
    %55 = vset.pattern.permute.xlu0 0
    %56 = vperm.xlu0 %55, %v34
    %v57 = vpop.permute.xlu0 %56
    %60 = vset.pattern.permute.xlu0 0
    %61 = vperm.xlu0 %60, %v35
    %v62 = vpop.permute.xlu0 %61
    %65 = vset.pattern.permute.xlu0 0
    %66 = vperm.xlu0 %65, %v36
    %v67 = vpop.permute.xlu0 %66
    %70 = vset.pattern.permute.xlu0 0
    %71 = vperm.xlu0 %70, %v37
    %v72 = vpop.permute.xlu0 %71
    %75 = vset.pattern.permute.xlu0 0
    %76 = vperm.xlu0 %75, %v38
    %v77 = vpop.permute.xlu0 %76
    %vm79 = vcmask 97280
    %v81 = vsel %vm79, %v21, 0
    %v84 = vsel %vm79, %v22, 0
    %v87 = vsel %vm79, %v23, 0
    %v90 = vsel %vm79, %v24, 0
    %v93 = vsel %vm79, %v25, 0
    %v96 = vsel %vm79, %v26, 0
    %v99 = vsel %vm79, %v27, 0
    %v102 = vsel %vm79, %v28, 0
    %vm104 = vcmask 1043456
    %v106 = vsel %vm104, %v30, 0
    %108 = vmatprep.subr.mxu0 0.0
    %109 = vmatpush1.msra.mxu0 %v29
    %110 = vmatprep.subr.mxu0 0.0
    %111 = vmatpush1.msra.mxu0 %v106
    %112 = vmatprep.subr.mxu0 0.0
    %113 = vmatpush1.msra.mxu0 0.0
    %114 = vmatprep.subr.mxu0 0.0
    %115 = vmatpush1.msra.mxu0 0.0
    %116 = vmatprep.subr.mxu0 0.0
    %117 = vmatpush1.msra.mxu0 0.0
    %118 = vmatprep.subr.mxu0 0.0
    %119 = vmatpush1.msra.mxu0 0.0
    %120 = vmatprep.subr.mxu0 0.0
    %121 = vmatpush1.msra.mxu0 0.0
    %122 = vmatprep.subr.mxu0 0.0
    %123 = vmatpush1.msra.mxu0 0.0
    %124 = vmatprep.subr.mxu0 0.0
    %125 = vmatpush1.msra.mxu0 0.0
    %126 = vmatprep.subr.mxu0 0.0
    %127 = vmatpush1.msra.mxu0 0.0
    %128 = vmatprep.subr.mxu0 0.0
    %129 = vmatpush1.msra.mxu0 0.0
    %130 = vmatprep.subr.mxu0 0.0
    %131 = vmatpush1.msra.mxu0 0.0
    %132 = vmatprep.subr.mxu0 0.0
    %133 = vmatpush1.msra.mxu0 0.0
    %134 = vmatprep.subr.mxu0 0.0
    %135 = vmatpush1.msra.mxu0 0.0
    %136 = vmatprep.subr.mxu0 0.0
    %137 = vmatpush1.msra.mxu0 0.0
    %138 = vmatprep.subr.mxu0 0.0
    %139 = vmatpush1.msra.mxu0 0.0
    %140 = vmatprep.subr.mxu0 0.0
    %141 = vmatpush1.msra.mxu0 0.0
    %142 = vmatprep.subr.mxu0 0.0
    %143 = vmatpush1.msra.mxu0 0.0
    %144 = vmatprep.subr.mxu0 0.0
    %145 = vmatpush1.msra.mxu0 0.0
    %146 = vmatprep.subr.mxu0 0.0
    %147 = vmatpush1.msra.mxu0 0.0
    %148 = vmatprep.subr.mxu0 0.0
    %149 = vmatpush1.msra.mxu0 0.0
    %150 = vmatprep.subr.mxu0 0.0
    %151 = vmatpush1.msra.mxu0 0.0
    %152 = vmatprep.subr.mxu0 0.0
    %153 = vmatpush1.msra.mxu0 0.0
    %154 = vmatprep.subr.mxu0 0.0
    %155 = vmatpush1.msra.mxu0 0.0
    %156 = vmatprep.subr.mxu0 0.0
    %157 = vmatpush1.msra.mxu0 0.0
    %158 = vmatprep.subr.mxu0 0.0
    %159 = vmatpush1.msra.mxu0 0.0
    %160 = vmatprep.subr.mxu0 0.0
    %161 = vmatpush1.msra.mxu0 0.0
    %162 = vmatprep.subr.mxu0 0.0
    %163 = vmatpush1.msra.mxu0 0.0
    %164 = vmatprep.subr.mxu0 0.0
    %165 = vmatpush1.msra.mxu0 0.0
    %166 = vmatprep.subr.mxu0 0.0
    %167 = vmatpush1.msra.mxu0 0.0
    %168 = vmatprep.subr.mxu0 0.0
    %169 = vmatpush1.msra.mxu0 0.0
    %170 = vmatprep.subr.mxu0 0.0
    %171 = vmatpush1.msra.mxu0 0.0
    %172 = vmatprep.mubr.f32.mxu0 0.0
    %173 = vmatmul.mubr.f32.gmra.mrb[0].mxu0 %v81
    %v174 = vpop.f32.mrb[0].mxu0
    %v175 = vadd.f32 %v42, %v174
    %v176 = vpop.f32.mrb[0].mxu0
    %177 = vmatprep.mubr.f32.mxu0 0.0
    %178 = vmatmul.mubr.f32.gmra.mrb[0].mxu0 %v84
    %v179 = vpop.f32.mrb[0].mxu0
    %v180 = vadd.f32 %v47, %v179
    %v181 = vpop.f32.mrb[0].mxu0
    %182 = vmatprep.mubr.f32.mxu0 0.0
    %183 = vmatmul.mubr.f32.gmra.mrb[0].mxu0 %v87
    %v184 = vpop.f32.mrb[0].mxu0
    %v185 = vadd.f32 %v52, %v184
    %v186 = vpop.f32.mrb[0].mxu0
    %187 = vmatprep.mubr.f32.mxu0 0.0
    %188 = vmatmul.mubr.f32.gmra.mrb[0].mxu0 %v90
    %v189 = vpop.f32.mrb[0].mxu0
    %v190 = vadd.f32 %v57, %v189
    %v191 = vpop.f32.mrb[0].mxu0
    %192 = vmatprep.mubr.f32.mxu0 0.0
    %193 = vmatmul.mubr.f32.gmra.mrb[0].mxu0 %v93
    %v194 = vpop.f32.mrb[0].mxu0
    %v195 = vadd.f32 %v62, %v194
    %v196 = vpop.f32.mrb[0].mxu0
    %197 = vmatprep.mubr.f32.mxu0 0.0
    %198 = vmatmul.mubr.f32.gmra.mrb[0].mxu0 %v96
    %v199 = vpop.f32.mrb[0].mxu0
    %v200 = vadd.f32 %v67, %v199
    %v201 = vpop.f32.mrb[0].mxu0
    %202 = vmatprep.mubr.f32.mxu0 0.0
    %203 = vmatmul.mubr.f32.gmra.mrb[0].mxu0 %v99
    %v204 = vpop.f32.mrb[0].mxu0
    %v205 = vadd.f32 %v72, %v204
    %v206 = vpop.f32.mrb[0].mxu0
    %207 = vmatprep.mubr.f32.mxu0 0.0
    %208 = vmatmul.mubr.f32.gmra.mrb[0].mxu0 %v102
    %v209 = vpop.f32.mrb[0].mxu0
    %v210 = vadd.f32 %v77, %v209
    %v211 = vpop.f32.mrb[0].mxu0
    %212 = vdwg.mxu0
    %v213 = vmax.f32 %v175, 0.0
    %v214 = vmax.f32 %v180, 0.0
    %v215 = vmax.f32 %v185, 0.0
    %v216 = vmax.f32 %v190, 0.0
    %v217 = vmax.f32 %v195, 0.0
    %v218 = vmax.f32 %v200, 0.0
    %v219 = vmax.f32 %v205, 0.0
    %v220 = vmax.f32 %v210, 0.0
    %v221 = vld [vmem:[%s3] sm:$0xff]
    %v222 = vld [vmem:[%s3 + $0x8] sm:$0x3]
    %v223 = vld [vmem:[%s4] sm:$0xff]
    %v224 = vld [vmem:[%s4 + $0x8] sm:$0x3]
    %226 = vset.pattern.permute.xlu0 0
    %227 = vperm.xlu0 %226, %v223
    %v228 = vpop.permute.xlu0 %227
    %231 = vset.pattern.permute.xlu0 0
    %232 = vperm.xlu0 %231, %v224
    %v233 = vpop.permute.xlu0 %232
    %vm235 = vcmask 523264
    %v237 = vsel %vm235, %v221, 0
    %v240 = vsel %vm235, %v222, 0
    %242 = vmatprep.subr.mxu0 0.0
    %243 = vmatpush1.msra.mxu0 %v213
    %244 = vmatprep.subr.mxu0 0.0
    %245 = vmatpush1.msra.mxu0 %v214
    %246 = vmatprep.subr.mxu0 0.0
    %247 = vmatpush1.msra.mxu0 %v215
    %248 = vmatprep.subr.mxu0 0.0
    %249 = vmatpush1.msra.mxu0 %v216
    %250 = vmatprep.subr.mxu0 0.0
    %251 = vmatpush1.msra.mxu0 %v217
    %252 = vmatprep.subr.mxu0 0.0
    %253 = vmatpush1.msra.mxu0 %v218
    %254 = vmatprep.subr.mxu0 0.0
    %255 = vmatpush1.msra.mxu0 %v219
    %256 = vmatprep.subr.mxu0 0.0
    %257 = vmatpush1.msra.mxu0 %v220
    %258 = vmatprep.subr.mxu0 0.0
    %259 = vmatpush1.msra.mxu0 0.0
    %260 = vmatprep.subr.mxu0 0.0
    %261 = vmatpush1.msra.mxu0 0.0
    %262 = vmatprep.subr.mxu0 0.0
    %263 = vmatpush1.msra.mxu0 0.0
    %264 = vmatprep.subr.mxu0 0.0
    %265 = vmatpush1.msra.mxu0 0.0
    %266 = vmatprep.subr.mxu0 0.0
    %267 = vmatpush1.msra.mxu0 0.0
    %268 = vmatprep.subr.mxu0 0.0
    %269 = vmatpush1.msra.mxu0 0.0
    %270 = vmatprep.subr.mxu0 0.0
    %271 = vmatpush1.msra.mxu0 0.0
    %272 = vmatprep.subr.mxu0 0.0
    %273 = vmatpush1.msra.mxu0 0.0
    %274 = vmatprep.subr.mxu0 0.0
    %275 = vmatpush1.msra.mxu0 0.0
    %276 = vmatprep.subr.mxu0 0.0
    %277 = vmatpush1.msra.mxu0 0.0
    %278 = vmatprep.subr.mxu0 0.0
    %279 = vmatpush1.msra.mxu0 0.0
    %280 = vmatprep.subr.mxu0 0.0
    %281 = vmatpush1.msra.mxu0 0.0
    %282 = vmatprep.subr.mxu0 0.0
    %283 = vmatpush1.msra.mxu0 0.0
    %284 = vmatprep.subr.mxu0 0.0
    %285 = vmatpush1.msra.mxu0 0.0
    %286 = vmatprep.subr.mxu0 0.0
    %287 = vmatpush1.msra.mxu0 0.0
    %288 = vmatprep.subr.mxu0 0.0
    %289 = vmatpush1.msra.mxu0 0.0
    %290 = vmatprep.subr.mxu0 0.0
    %291 = vmatpush1.msra.mxu0 0.0
    %292 = vmatprep.subr.mxu0 0.0
    %293 = vmatpush1.msra.mxu0 0.0
    %294 = vmatprep.subr.mxu0 0.0
    %295 = vmatpush1.msra.mxu0 0.0
    %296 = vmatprep.subr.mxu0 0.0
    %297 = vmatpush1.msra.mxu0 0.0
    %298 = vmatprep.subr.mxu0 0.0
    %299 = vmatpush1.msra.mxu0 0.0
    %300 = vmatprep.subr.mxu0 0.0
    %301 = vmatpush1.msra.mxu0 0.0
    %302 = vmatprep.subr.mxu0 0.0
    %303 = vmatpush1.msra.mxu0 0.0
    %304 = vmatprep.subr.mxu0 0.0
    %305 = vmatpush1.msra.mxu0 0.0
    %306 = vmatprep.mubr.f32.mxu0 0.0
    %307 = vmatmul.mubr.f32.gmra.mrb[0].mxu0 %v237
    %v308 = vpop.f32.mrb[0].mxu0
    %v309 = vadd.f32 %v228, %v308
    %v310 = vpop.f32.mrb[0].mxu0
    %311 = vmatprep.mubr.f32.mxu0 0.0
    %312 = vmatmul.mubr.f32.gmra.mrb[0].mxu0 %v240
    %v313 = vpop.f32.mrb[0].mxu0
    %v314 = vadd.f32 %v233, %v313
    %v315 = vpop.f32.mrb[0].mxu0
    %316 = vdwg.mxu0
    %317 = vst [vmem:[#allocation2] sm:$0xff] %v309
    %318 = vst [vmem:[#allocation2 + $0x8] sm:$0x3] %v314
    // Predicated region
    $region22: #{tpu_custom_call.1} parent=1 // pred_check
      _
    $region23: #{tpu_custom_call.1} parent=1 // pred_check_branch
      %320 = sbr.rel (0) target = $region25
    $region24: #{tpu_custom_call.1} parent=1 // pred_region
      %s322 = ssub.s32 256, 256
      %323 = vsyncadd [#allocation3], %s322
      %s324 = sshll.u32 [#allocation2], 4
      %s325 = int_to_ptr.vmem [resolvable:$true] %s324
      %330 = dma.vmem_to_hbm [thread:$0]  %s325, 256, %s5, [#allocation3], 128, 128, 8
    $region25: #{tpu_custom_call.1} parent=1 // pred_fallthru
      _
    // Predicated region
    $region26: #{tpu_custom_call.1} parent=1 // pred_check
      _
    $region27: #{tpu_custom_call.1} parent=1 // pred_check_branch
      %332 = sbr.rel (0) target = $region29
    $region28: #{tpu_custom_call.1} parent=1 // pred_region
      %333 = dma.done [#allocation3], 256
    $region29: #{tpu_custom_call.1} parent=1 // pred_fallthru
      _
    %334 = vsyncpa [#allocation3], 1

</llo_original>
